<compile_context>
chip_gen: v5e
topology: v5e:2x2
jax: 0.10.0
libtpu: 0.0.40
codegen_flags: <defaults>
</compile_context>

<pallas_src>
import functools

import jax
import jax.numpy as jnp
from jax.experimental import pallas as pl
from jax.experimental.pallas import tpu as pltpu

_LANE = 128


def _round_up(v, m):
    return ((v + m - 1) // m) * m


def _relu_kernel(x_ref, o_ref):
    # Single vmax per vreg; HBM DMA is the binding resource.
    o_ref[...] = jnp.maximum(x_ref[...], 0)


def _relu_2d(x2d, tile_rows, vmem_limit_bytes):
    rows, lane = x2d.shape
    return pl.pallas_call(
        _relu_kernel,
        out_shape=jax.ShapeDtypeStruct((rows, lane), x2d.dtype),
        grid_spec=pltpu.PrefetchScalarGridSpec(
            num_scalar_prefetch=0,
            grid=(pl.cdiv(rows, tile_rows),),
            in_specs=[pl.BlockSpec((tile_rows, lane), lambda i: (i, 0))],
            out_specs=pl.BlockSpec((tile_rows, lane), lambda i: (i, 0)),
        ),
        compiler_params=pltpu.CompilerParams(
            dimension_semantics=("parallel",),
            vmem_limit_bytes=vmem_limit_bytes,
        ),
    )(x2d)


def _chip_config():
    """Trace-time hardware query -> (is_v7x, block_bytes, vmem_limit_bytes)."""
    try:
        vmem_cap = int(pltpu.get_tpu_info().vmem_capacity_bytes)
    except Exception:  # pragma: no cover - conservative default
        vmem_cap = 128 << 20
    # v7x has 64 MiB VMEM per TensorCore (and 2 TCs); v5e/v6e have 128 MiB.
    is_v7x = vmem_cap <= (80 << 20)
    if is_v7x:
        # 8 MiB blocks -> ~32 MiB resident with double-buffered in+out.
        return True, 8 << 20, 40 << 20
    # v5e/v6e: 4 MiB blocks -> ~16 MiB resident; explicit limit covers v5e's
    # 16 MiB scoped default (physical VMEM is 128 MiB on both).
    return False, 4 << 20, 64 << 20


@functools.partial(jax.jit, static_argnames=("min_pallas_bytes",))
def relu_pallas(x, *, min_pallas_bytes=1 << 20):
    """Elementwise ReLU matching torch semantics: out[x < 0] = 0, else passthrough."""
    orig_shape = x.shape
    n = x.size
    itemsize = x.dtype.itemsize

    # Tiny inputs: a standalone pallas_call is pure launch/grid overhead.
    if n == 0 or n * itemsize < min_pallas_bytes or n < _LANE:
        return jnp.maximum(x, 0)

    is_v7x, block_bytes, vmem_limit = _chip_config()

    # Dtype-aware packed-sublane count: 8 (f32) / 16 (bf16) / 32 (int8, fp8).
    packing = max(1, 4 // itemsize)
    sublane = 8 * packing

    # Lane-aligned prefix goes through the kernel; the <128-elem tail (if any)
    # is handled with a plain vmax in the wrapper (no pad, no slice-copy).
    n_main = n - (n % _LANE)
    flat = x.reshape(-1)
    main2d = flat[:n_main].reshape(-1, _LANE)  # (rows, 128), lane-dense
    rows = main2d.shape[0]
    main_bytes = n_main * itemsize

    # Constant-byte tile: pick rows per block from the per-chip byte budget.
    block_rows = max(sublane, (block_bytes // (_LANE * itemsize)) // sublane * sublane)
    tr = min(block_rows, _round_up(rows, sublane))

    # v7x only: if the grid would collapse to one step but each half is big
    # enough (>= 2 MiB) to amortize the per-step cost, split across the 2 TCs.
    if is_v7x and pl.cdiv(rows, tr) < 2 and main_bytes >= (4 << 20):
        tr = _round_up((rows + 1) // 2, sublane)
    tr = max(sublane, tr)

    main_out = _relu_2d(main2d, tr, vmem_limit).reshape(-1)

    n_tail = n - n_main
    if n_tail > 0:
        tail_out = jnp.maximum(flat[n_main:], 0)
        out_flat = jnp.concatenate([main_out, tail_out])
    else:
        out_flat = main_out
    return out_flat.reshape(orig_shape)


if __name__ == "__main__":
    key = jax.random.PRNGKey(0)

    # Small NCHW input consistent with the convnet context: batch=2, C=4, H=W=16.
    x = jax.random.normal(key, (2, 4, 16, 16), dtype=jnp.float32)
    out = jax.block_until_ready(relu_pallas(x, min_pallas_bytes=0))
    ref = jnp.where(x < 0, 0.0, x)
    assert out.shape == x.shape and out.dtype == x.dtype
    assert jnp.array_equal(out, ref), "mismatch vs reference ReLU (f32, aligned)"

    # Misaligned element count -> exercises kernel-prefix + wrapper-tail path.
    x2 = jax.random.normal(jax.random.PRNGKey(0), (3, 5, 31, 33), dtype=jnp.float32)
    out2 = jax.block_until_ready(relu_pallas(x2, min_pallas_bytes=0))
    assert jnp.array_equal(out2, jnp.where(x2 < 0, 0.0, x2)), "mismatch (misaligned)"

    # bf16 -> exercises dtype-aware packed-sublane tiling.
    x3 = x.astype(jnp.bfloat16)
    out3 = jax.block_until_ready(relu_pallas(x3, min_pallas_bytes=0))
    assert out3.dtype == jnp.bfloat16
    assert jnp.array_equal(out3, jnp.where(x3 < 0, jnp.bfloat16(0), x3)), "mismatch (bf16)"

    print("KERNEL_OK")
</pallas_src>

<mosaic_0001>
module attributes {stable_mosaic.version = 11 : i64} {
  func.func @_relu_kernel(%arg0: i32, %arg1: memref<16x128xf32, #tpu.memory_space<vmem>>, %arg2: memref<16x128xf32, #tpu.memory_space<vmem>>) attributes {dimension_semantics = [#tpu.dimension_semantics<parallel>], iteration_bounds = array<i64: 1>, scalar_prefetch = 0 : i64, scratch_operands = 0 : i64, tpu.core_type = #tpu.core_type<tc>, window_params = [{transform_indices = @transform_0, window_bounds = array<i64: 16, 128>}, {transform_indices = @transform_1, window_bounds = array<i64: 16, 128>}]} {
    %c0 = arith.constant 0 : index
    %c0_0 = arith.constant 0 : index
    %0 = vector.load %arg1[%c0, %c0_0] : memref<16x128xf32, #tpu.memory_space<vmem>>, vector<16x128xf32>
    %cst = arith.constant 0.000000e+00 : f32
    %1 = vector.broadcast %cst : f32 to vector<16x128xf32>
    %2 = arith.maximumf %0, %1 : vector<16x128xf32>
    %c0_1 = arith.constant 0 : index
    %c0_2 = arith.constant 0 : index
    %3 = vector.load %arg2[%c0_1, %c0_2] : memref<16x128xf32, #tpu.memory_space<vmem>>, vector<16x128xf32>
    tpu.vector_store %arg2[%c0_1, %c0_2], %2 {strides = array<i32>} : memref<16x128xf32, #tpu.memory_space<vmem>>, vector<16x128xf32>,
    return
  }
  func.func @transform_0(%arg0: i32) -> (i32, i32) {
    %c0_i32 = arith.constant 0 : i32
    %c0_i32_0 = arith.constant 0 : i32
    return %arg0, %c0_i32 : i32, i32
  }
  func.func @transform_1(%arg0: i32) -> (i32, i32) {
    %c0_i32 = arith.constant 0 : i32
    %c0_i32_0 = arith.constant 0 : i32
    return %arg0, %c0_i32 : i32, i32
  }
}

</mosaic_0001>

<llo_original>
// kernel: relu_pallas.1
$region0: #{relu_pallas.1}
  #allocation0 [shape = 'u32[]', space=smem, size = 0x4, offset = 0x4, fixed_abs, tag = 'smem constant byte address 0x4 - core index']
  #allocation1 [shape = 'u32[72,128]{1,0:T(1,128)}', space=vmem, size = 0x9000, scoped, tag = 'internal scratch']
  %s0 = inlined_call_operand.vmem [shape: f32[16,128], index: 0, kind: input, shape index: {}]
  %s1 = inlined_call_operand.vmem [shape: f32[16,128], index: 1, kind: output, shape index: {}]
  %s2 = sld [smem:[#allocation0]]
  $region14: #{relu_pallas.1} parent=0
    _
  %s4 = ssub.s32 1, %s2
  %s5 = scalar_select 0, %s4, %s2
  // Predicated region
  $region2: #{relu_pallas.1} parent=0 // pred_check
    _
  $region3: #{relu_pallas.1} parent=0 // pred_check_branch
    %7 = sbr.rel (0) target = $region5
  $region4: #{relu_pallas.1} parent=0 // pred_region
    _
  $region5: #{relu_pallas.1} parent=0 // pred_fallthru
    _
  %v8 = vld [vmem:[%s0] sm:$0xff]
  %v9 = vld [vmem:[%s0 + $0x8] sm:$0xff]
  %v10 = vmax.f32 %v8, 0.0
  %v11 = vmax.f32 %v9, 0.0
  %12 = vst [vmem:[%s1] sm:$0xff] %v10
  %13 = vst [vmem:[%s1 + $0x8] sm:$0xff] %v11
  // Predicated region
  $region6: #{relu_pallas.1} parent=0 // pred_check
    _
  $region7: #{relu_pallas.1} parent=0 // pred_check_branch
    %15 = sbr.rel (0) target = $region9
  $region8: #{relu_pallas.1} parent=0 // pred_region
    _
  $region9: #{relu_pallas.1} parent=0 // pred_fallthru
    _
  // Predicated region
  $region10: #{relu_pallas.1} parent=0 // pred_check
    _
  $region11: #{relu_pallas.1} parent=0 // pred_check_branch
    %17 = sbr.rel (0) target = $region13
  $region12: #{relu_pallas.1} parent=0 // pred_region
    _
  $region13: #{relu_pallas.1} parent=0 // pred_fallthru
    _

</llo_original>
